<compile_context>
chip_gen: v7x
topology: tpu7x:2x2x1
jax: 0.10.0
libtpu: 0.0.40
codegen_flags: <defaults>
</compile_context>

<pallas_src>
import jax
import jax.numpy as jnp
from jax.experimental import pallas as pl
from jax.experimental.pallas import tpu as pltpu

LN_EPS = 1e-5   # PyTorch nn.LayerNorm default
LANE = 128      # TPU lane width
SUB = 8         # TPU sublane width


def _round_up(x, m):
    return (x + m - 1) // m * m


# ----------------------------- Fused Pallas kernel ------------------------- #

def make_mlp_kernel(arch, lane_pad):
    """Fused MLP kernel reading two packed param slabs, writing one out slab.

    Activations are kept lane-padded to `lane_pad` with EXACT zeros in the
    padded lanes (weights/bias/gamma/beta slabs are zero-padded), so every
    block is a clean full-width (B, lane_pad) value and no masked stores are
    needed.  LayerNorm sums over the full padded width divide by the real
    feature count (padded lanes contribute 0).
    """
    n = len(arch) - 1
    in0_pad = _round_up(arch[0], SUB)

    def kernel(x_ref, w_ref, v_ref, out_ref):
        h = x_ref[...]                       # (B, arch[0])
        w_row = 0
        v_row = 0
        blocks = []
        for i in range(n):
            out_i = arch[i + 1]
            last = (i == n - 1)

            if i == 0:
                w = w_ref[0:arch[0], :]                      # (arch[0], lane_pad)
                w_row = in0_pad
            else:
                w = w_ref[w_row:w_row + lane_pad, :]         # (lane_pad, lane_pad)
                w_row += lane_pad
            b = v_ref[v_row:v_row + 1, :]                    # (1, lane_pad)
            v_row += 1

            # y = h @ W + b  (MXU, f32 accumulation); padded lanes stay 0.
            y = jnp.dot(h, w, preferred_element_type=jnp.float32) + b
            blocks.append(y)

            if not last:
                gamma = v_ref[v_row:v_row + 1, :]
                beta = v_ref[v_row + 1:v_row + 2, :]
                v_row += 2

                a = jnp.tanh(y)                              # EUP; tanh(0)=0 in pad
                blocks.append(a)

                # LayerNorm with two independent XLU reductions.
                inv_n = 1.0 / float(out_i)
                s1 = jnp.sum(a, axis=-1, keepdims=True)          # sums over real lanes
                s2 = jnp.sum(a * a, axis=-1, keepdims=True)      # (pad lanes are 0)
                m = s1 * inv_n
                var = s2 * inv_n - m * m
                h = (a - m) * jax.lax.rsqrt(var + LN_EPS) * gamma + beta
                blocks.append(h)                             # pad lanes -> 0 (gamma/beta=0)
            else:
                h = y

        # Single unmasked, lane-dense (B, n_blocks*lane_pad) store.
        out_ref[...] = jnp.concatenate(blocks, axis=-1)

    return kernel


# ------------------------- Parameter construction / packing ---------------- #

def init_params(key, arch):
    """PyTorch-style init U(-1/sqrt(fan_in), 1/sqrt(fan_in)), torch layouts."""
    params = []
    for i, (inp, out) in enumerate(zip(arch[:-1], arch[1:])):
        key, kw, kb = jax.random.split(key, 3)
        bound = 1.0 / float(inp) ** 0.5
        p = {
            "w": jax.random.uniform(kw, (out, inp), jnp.float32, -bound, bound),
            "b": jax.random.uniform(kb, (out,), jnp.float32, -bound, bound),
        }
        if i < len(arch) - 2:            # followed by Tanh + LayerNorm(out)
            p["gamma"] = jnp.ones((out,), jnp.float32)
            p["beta"] = jnp.zeros((out,), jnp.float32)
        params.append(p)
    return params


def pack_params(params, arch):
    """One-time packing of all params into two padded, lane-dense slabs."""
    n = len(arch) - 1
    lane_pad = _round_up(max(arch[1:]), LANE)
    in0_pad = _round_up(arch[0], SUB)

    w_rows = in0_pad + (n - 1) * lane_pad
    w_slab = jnp.zeros((w_rows, lane_pad), jnp.float32)

    n_vec = 3 * (n - 1) + 1
    v_rows = _round_up(n_vec, SUB)
    v_slab = jnp.zeros((v_rows, lane_pad), jnp.float32)

    w_row = 0
    v_row = 0
    for i, p in enumerate(params):
        in_i, out_i = arch[i], arch[i + 1]
        w_t = p["w"].T                                       # (in, out), one-time
        w_slab = w_slab.at[w_row:w_row + in_i, :out_i].set(w_t)
        w_row += in0_pad if i == 0 else lane_pad
        v_slab = v_slab.at[v_row, :out_i].set(p["b"])
        v_row += 1
        if i < n - 1:
            v_slab = v_slab.at[v_row, :out_i].set(p["gamma"])
            v_slab = v_slab.at[v_row + 1, :out_i].set(p["beta"])
            v_row += 2

    return {"w_slab": w_slab, "v_slab": v_slab, "lane_pad": lane_pad}


# ------------------------------ Wrapper ------------------------------------ #

def mlp_forward(x, packed, arch):
    """Matches MLP.forward: returns (outs[-1], outs[:-1])."""
    n = len(arch) - 1
    B = x.shape[0]
    lane_pad = packed["lane_pad"]
    n_blocks = 3 * (n - 1) + 1
    out_lanes = n_blocks * lane_pad

    flops = 2 * B * sum(arch[i] * arch[i + 1] for i in range(n))
    trans = B * sum(arch[i + 1] for i in range(n - 1))
    bytes_accessed = 4 * (x.size + packed["w_slab"].size
                          + packed["v_slab"].size + B * out_lanes)

    vmem = pl.BlockSpec(memory_space=pltpu.MemorySpace.VMEM)
    out_slab = pl.pallas_call(
        make_mlp_kernel(arch, lane_pad),
        in_specs=[vmem, vmem, vmem],
        out_specs=vmem,
        out_shape=jax.ShapeDtypeStruct((B, out_lanes), jnp.float32),
        cost_estimate=pl.CostEstimate(flops=flops, transcendentals=trans,
                                      bytes_accessed=bytes_accessed),
    )(x, packed["w_slab"], packed["v_slab"])

    # Unpack the lane-dense slab back into the module's return structure
    # (wrapper-side slices are layout plumbing; they fuse into consumers).
    outs = [x]
    col = 0
    for i in range(n):
        out_i = arch[i + 1]
        outs.append(out_slab[:, col:col + out_i]); col += lane_pad       # lin_i
        if i < n - 1:
            outs.append(out_slab[:, col:col + out_i]); col += lane_pad   # tanh_i
            outs.append(out_slab[:, col:col + out_i]); col += lane_pad   # ln_i
    outs.append(outs[-1])            # last_activation = Identity layer
    return outs[-1], outs[:-1]


# --------------------------------- Main ------------------------------------ #

if __name__ == "__main__":
    arch = [32, 64, 32]
    batch = 8

    key = jax.random.PRNGKey(0)
    key, kx = jax.random.split(key)
    x = jax.random.normal(kx, (batch, arch[0]), dtype=jnp.float32)
    params = init_params(key, arch)
    packed = pack_params(params, arch)

    final_out, intermediates = mlp_forward(x, packed, arch)
    jax.block_until_ready(final_out)
    jax.block_until_ready(intermediates)

    # Pure-JAX reference using the original torch-layout params.
    def ref_forward(x, params):
        outs = [x]
        n = len(params)
        for i, p in enumerate(params):
            y = outs[-1] @ p["w"].T + p["b"]
            outs.append(y)
            if i < n - 1:
                a = jnp.tanh(y)
                outs.append(a)
                m = jnp.mean(a, axis=-1, keepdims=True)
                v = jnp.mean(jnp.square(a - m), axis=-1, keepdims=True)
                outs.append((a - m) * jax.lax.rsqrt(v + LN_EPS)
                            * p["gamma"] + p["beta"])
        outs.append(outs[-1])        # Identity layer
        return outs[-1], outs[:-1]

    ref_final, ref_inter = ref_forward(x, params)
    assert jnp.allclose(final_out, ref_final, atol=1e-5), "final output mismatch"
    assert len(intermediates) == len(ref_inter), "intermediate count mismatch"
    for a, b in zip(intermediates, ref_inter):
        assert jnp.allclose(a, b, atol=1e-5), "intermediate mismatch"

    print("KERNEL_OK")
</pallas_src>

<mosaic_0001>
module attributes {stable_mosaic.version = 11 : i64} {
  func.func @kernel(%arg0: memref<8x32xf32, #tpu.memory_space<vmem>>, %arg1: memref<160x128xf32, #tpu.memory_space<vmem>>, %arg2: memref<8x128xf32, #tpu.memory_space<vmem>>, %arg3: memref<8x512xf32, #tpu.memory_space<vmem>>) attributes {dimension_semantics = [], scalar_prefetch = 0 : i64, scratch_operands = 0 : i64, tpu.core_type = #tpu.core_type<tc>} {
    %c0 = arith.constant 0 : index
    %c0_0 = arith.constant 0 : index
    %0 = vector.load %arg0[%c0, %c0_0] : memref<8x32xf32, #tpu.memory_space<vmem>>, vector<8x32xf32>
    %c0_1 = arith.constant 0 : index
    %c0_2 = arith.constant 0 : index
    %1 = vector.load %arg1[%c0_1, %c0_2] : memref<160x128xf32, #tpu.memory_space<vmem>>, vector<32x128xf32>
    %c0_3 = arith.constant 0 : index
    %c0_4 = arith.constant 0 : index
    %2 = vector.load %arg2[%c0_3, %c0_4] : memref<8x128xf32, #tpu.memory_space<vmem>>, vector<1x128xf32>
    %cst = arith.constant dense<0.000000e+00> : vector<8x128xf32>
    %3 = tpu.matmul %0, %1, %cst {dimension_numbers = #tpu.dot_dimension_numbers<[1], [0], [0], [1], [0, 0, 1, 1], [], []>} : vector<8x32xf32>, vector<32x128xf32>, vector<8x128xf32> -> vector<8x128xf32>
    %4 = vector.broadcast %2 : vector<1x128xf32> to vector<8x128xf32>
    %5 = arith.addf %3, %4 : vector<8x128xf32>
    %c1 = arith.constant 1 : index
    %c0_5 = arith.constant 0 : index
    %6 = vector.load %arg2[%c1, %c0_5] : memref<8x128xf32, #tpu.memory_space<vmem>>, vector<1x128xf32>
    %c2 = arith.constant 2 : index
    %c0_6 = arith.constant 0 : index
    %7 = vector.load %arg2[%c2, %c0_6] : memref<8x128xf32, #tpu.memory_space<vmem>>, vector<1x128xf32>
    %8 = math.tanh %5 : vector<8x128xf32>
    %cst_7 = arith.constant dense<0.000000e+00> : vector<8xf32>
    %9 = vector.multi_reduction <add>, %8, %cst_7 [1] : vector<8x128xf32> to vector<8xf32>
    %10 = vector.shape_cast %9 : vector<8xf32> to vector<8x1xf32>
    %11 = arith.mulf %8, %8 : vector<8x128xf32>
    %cst_8 = arith.constant dense<0.000000e+00> : vector<8xf32>
    %12 = vector.multi_reduction <add>, %11, %cst_8 [1] : vector<8x128xf32> to vector<8xf32>
    %13 = vector.shape_cast %12 : vector<8xf32> to vector<8x1xf32>
    %cst_9 = arith.constant 1.562500e-02 : f32
    %14 = vector.broadcast %cst_9 : f32 to vector<8x1xf32>
    %15 = arith.mulf %10, %14 : vector<8x1xf32>
    %cst_10 = arith.constant 1.562500e-02 : f32
    %16 = vector.broadcast %cst_10 : f32 to vector<8x1xf32>
    %17 = arith.mulf %13, %16 : vector<8x1xf32>
    %18 = arith.mulf %15, %15 : vector<8x1xf32>
    %19 = arith.subf %17, %18 : vector<8x1xf32>
    %20 = vector.broadcast %15 : vector<8x1xf32> to vector<8x128xf32>
    %21 = arith.subf %8, %20 : vector<8x128xf32>
    %cst_11 = arith.constant 9.99999974E-6 : f32
    %22 = vector.broadcast %cst_11 : f32 to vector<8x1xf32>
    %23 = arith.addf %19, %22 : vector<8x1xf32>
    %24 = math.rsqrt %23 : vector<8x1xf32>
    %25 = vector.broadcast %24 : vector<8x1xf32> to vector<8x128xf32>
    %26 = arith.mulf %21, %25 : vector<8x128xf32>
    %27 = vector.broadcast %6 : vector<1x128xf32> to vector<8x128xf32>
    %28 = arith.mulf %26, %27 : vector<8x128xf32>
    %29 = vector.broadcast %7 : vector<1x128xf32> to vector<8x128xf32>
    %30 = arith.addf %28, %29 : vector<8x128xf32>
    %c32 = arith.constant 32 : index
    %c0_12 = arith.constant 0 : index
    %31 = vector.load %arg1[%c32, %c0_12] : memref<160x128xf32, #tpu.memory_space<vmem>>, vector<128x128xf32>
    %c3 = arith.constant 3 : index
    %c0_13 = arith.constant 0 : index
    %32 = vector.load %arg2[%c3, %c0_13] : memref<8x128xf32, #tpu.memory_space<vmem>>, vector<1x128xf32>
    %cst_14 = arith.constant dense<0.000000e+00> : vector<8x128xf32>
    %33 = tpu.matmul %30, %31, %cst_14 {dimension_numbers = #tpu.dot_dimension_numbers<[1], [0], [0], [1], [0, 0, 1, 1], [], []>} : vector<8x128xf32>, vector<128x128xf32>, vector<8x128xf32> -> vector<8x128xf32>
    %34 = vector.broadcast %32 : vector<1x128xf32> to vector<8x128xf32>
    %35 = arith.addf %33, %34 : vector<8x128xf32>
    %36 = tpu.concatenate %5, %8, %30, %35 in 1 : vector<8x128xf32>, vector<8x128xf32>, vector<8x128xf32>, vector<8x128xf32> -> vector<8x512xf32>
    %c0_15 = arith.constant 0 : index
    %c0_16 = arith.constant 0 : index
    %37 = vector.load %arg3[%c0_15, %c0_16] : memref<8x512xf32, #tpu.memory_space<vmem>>, vector<8x512xf32>
    tpu.vector_store %arg3[%c0_15, %c0_16], %36 {strides = array<i32>} : memref<8x512xf32, #tpu.memory_space<vmem>>, vector<8x512xf32>,
    return
  }
}

</mosaic_0001>

<llo_original>
// kernel: tpu_custom_call.1
$region0: #{tpu_custom_call.1}
  #allocation0 [shape = 'u32[]', space=smem, size = 0x4, offset = 0x4, fixed_abs, tag = 'smem constant byte address 0x4 - core index']
  #allocation1 [shape = 'u32[144,128]{1,0:T(1,128)}', space=vmem, size = 0x12000, scoped, tag = 'internal scratch']
  %s0 = inlined_call_operand.hbm [shape: f32[8,32], index: 0, kind: input, shape index: {}]
  %s1 = inlined_call_operand.hbm [shape: f32[160,128], index: 1, kind: input, shape index: {}]
  %s2 = inlined_call_operand.hbm [shape: f32[8,128], index: 2, kind: input, shape index: {}]
  %s3 = inlined_call_operand.hbm [shape: f32[8,512], index: 3, kind: output, shape index: {}]
  %s4 = sld [smem:[#allocation0]]
  $region34: #{tpu_custom_call.1} parent=0
    _
  %s6 = ssub.s32 1, %s4
  %s7 = scalar_select 0, %s6, %s4
  $region1: #{tpu_custom_call.1} parent=0
    #allocation2 [shape = 'u8[4096]{0}', space=vmem, size = 0x1000, scoped, tag = 'input window, operand 0, single buffered']
    #allocation3 [shape = 's32[1]{0}', space=sflag, size = 0x4, scoped, tag = 'scoped memory for tpu_custom_call.1']
    #allocation4 [shape = 's32[1]{0}', space=sflag, size = 0x4, scoped, tag = 'scoped memory for tpu_custom_call.1']
    #allocation5 [shape = 'u8[81920]{0}', space=vmem, size = 0x14000, scoped, tag = 'input window, operand 1, single buffered']
    #allocation6 [shape = 's32[1]{0}', space=sflag, size = 0x4, scoped, tag = 'scoped memory for tpu_custom_call.1']
    #allocation7 [shape = 'u8[4096]{0}', space=vmem, size = 0x1000, scoped, tag = 'input window, operand 2, single buffered']
    #allocation8 [shape = 'u8[16384]{0}', space=vmem, size = 0x4000, scoped, tag = 'output window, operand 0, single buffered']
    %8 = vsyncpa [#allocation3], 0
    %9 = vsyncpa [#allocation6], 0
    %10 = vsyncpa [#allocation4], 0
    // Predicated region
    $region2: #{tpu_custom_call.1} parent=1 // pred_check
      _
    $region3: #{tpu_custom_call.1} parent=1 // pred_check_branch
      %12 = sbr.rel (0) target = $region5
    $region4: #{tpu_custom_call.1} parent=1 // pred_region
      %s14 = ssub.s32 128, 128
      %15 = vsyncadd [#allocation3], %s14
      %s17 = sshll.u32 [#allocation2], 4
      %s18 = int_to_ptr.vmem [resolvable:$true] %s17
      %20 = dma.hbm_to_vmem [thread:$0]  %s0, 128, %s18, [#allocation3]
    $region5: #{tpu_custom_call.1} parent=1 // pred_fallthru
      _
    // Predicated region
    $region6: #{tpu_custom_call.1} parent=1 // pred_check
      _
    $region7: #{tpu_custom_call.1} parent=1 // pred_check_branch
      %22 = sbr.rel (0) target = $region9
    $region8: #{tpu_custom_call.1} parent=1 // pred_region
      %s24 = ssub.s32 2560, 2560
      %25 = vsyncadd [#allocation6], %s24
      %s26 = sshll.u32 [#allocation5], 4
      %s27 = int_to_ptr.vmem [resolvable:$true] %s26
      %32 = dma.hbm_to_vmem [thread:$0]  %s1, 2560, %s27, [#allocation6], 128, 128, 8
    $region9: #{tpu_custom_call.1} parent=1 // pred_fallthru
      _
    // Predicated region
    $region10: #{tpu_custom_call.1} parent=1 // pred_check
      _
    $region11: #{tpu_custom_call.1} parent=1 // pred_check_branch
      %34 = sbr.rel (0) target = $region13
    $region12: #{tpu_custom_call.1} parent=1 // pred_region
      %s36 = ssub.s32 128, 128
      %37 = vsyncadd [#allocation6], %s36
      %s39 = sshll.u32 [#allocation7], 4
      %s40 = int_to_ptr.vmem [resolvable:$true] %s39
      %42 = dma.hbm_to_vmem [thread:$0]  %s2, 128, %s40, [#allocation6]
    $region13: #{tpu_custom_call.1} parent=1 // pred_fallthru
      _
    // Predicated region
    $region14: #{tpu_custom_call.1} parent=1 // pred_check
      _
    $region15: #{tpu_custom_call.1} parent=1 // pred_check_branch
      %44 = sbr.rel (0) target = $region17
    $region16: #{tpu_custom_call.1} parent=1 // pred_region
      %45 = dma.done [#allocation3], 128
    $region17: #{tpu_custom_call.1} parent=1 // pred_fallthru
      _
    // Predicated region
    $region18: #{tpu_custom_call.1} parent=1 // pred_check
      _
    $region19: #{tpu_custom_call.1} parent=1 // pred_check_branch
      %47 = sbr.rel (0) target = $region21
    $region20: #{tpu_custom_call.1} parent=1 // pred_region
      %48 = dma.done [#allocation6], 2560
    $region21: #{tpu_custom_call.1} parent=1 // pred_fallthru
      _
    // Predicated region
    $region22: #{tpu_custom_call.1} parent=1 // pred_check
      _
    $region23: #{tpu_custom_call.1} parent=1 // pred_check_branch
      %50 = sbr.rel (0) target = $region25
    $region24: #{tpu_custom_call.1} parent=1 // pred_region
      %51 = dma.done [#allocation6], 128
    $region25: #{tpu_custom_call.1} parent=1 // pred_fallthru
      _
    %v52 = vld [vmem:[#allocation2] sm:$0xff]
    %v53 = vld [vmem:[#allocation5] sm:$0xff]
    %v54 = vld [vmem:[#allocation5 + $0x8] sm:$0xff]
    %v55 = vld [vmem:[#allocation5 + $0x10] sm:$0xff]
    %v56 = vld [vmem:[#allocation5 + $0x18] sm:$0xff]
    %v57 = vld [vmem:[#allocation7] sm:$0x1]
    %v58 = vlaneseq
    %v59 = vshrl.u32 %v58, 7
    %v60 = vsub.s32 0, %v59
    %v61 = vrot.slane %v57, %v60
    %vm62 = vcmask 261120
    %v64 = vsel %vm62, %v52, 0
    %66 = vmatprep.subr.mxu0 0.0
    %67 = vmatpush1.msra.mxu0 %v53
    %68 = vmatprep.subr.mxu0 0.0
    %69 = vmatpush1.msra.mxu0 %v54
    %70 = vmatprep.subr.mxu0 0.0
    %71 = vmatpush1.msra.mxu0 %v55
    %72 = vmatprep.subr.mxu0 0.0
    %73 = vmatpush1.msra.mxu0 %v56
    %74 = vmatprep.subr.mxu0 0.0
    %75 = vmatpush1.msra.mxu0 0.0
    %76 = vmatprep.subr.mxu0 0.0
    %77 = vmatpush1.msra.mxu0 0.0
    %78 = vmatprep.subr.mxu0 0.0
    %79 = vmatpush1.msra.mxu0 0.0
    %80 = vmatprep.subr.mxu0 0.0
    %81 = vmatpush1.msra.mxu0 0.0
    %82 = vmatprep.subr.mxu0 0.0
    %83 = vmatpush1.msra.mxu0 0.0
    %84 = vmatprep.subr.mxu0 0.0
    %85 = vmatpush1.msra.mxu0 0.0
    %86 = vmatprep.subr.mxu0 0.0
    %87 = vmatpush1.msra.mxu0 0.0
    %88 = vmatprep.subr.mxu0 0.0
    %89 = vmatpush1.msra.mxu0 0.0
    %90 = vmatprep.subr.mxu0 0.0
    %91 = vmatpush1.msra.mxu0 0.0
    %92 = vmatprep.subr.mxu0 0.0
    %93 = vmatpush1.msra.mxu0 0.0
    %94 = vmatprep.subr.mxu0 0.0
    %95 = vmatpush1.msra.mxu0 0.0
    %96 = vmatprep.subr.mxu0 0.0
    %97 = vmatpush1.msra.mxu0 0.0
    %98 = vmatprep.subr.mxu0 0.0
    %99 = vmatpush1.msra.mxu0 0.0
    %100 = vmatprep.subr.mxu0 0.0
    %101 = vmatpush1.msra.mxu0 0.0
    %102 = vmatprep.subr.mxu0 0.0
    %103 = vmatpush1.msra.mxu0 0.0
    %104 = vmatprep.subr.mxu0 0.0
    %105 = vmatpush1.msra.mxu0 0.0
    %106 = vmatprep.subr.mxu0 0.0
    %107 = vmatpush1.msra.mxu0 0.0
    %108 = vmatprep.subr.mxu0 0.0
    %109 = vmatpush1.msra.mxu0 0.0
    %110 = vmatprep.subr.mxu0 0.0
    %111 = vmatpush1.msra.mxu0 0.0
    %112 = vmatprep.subr.mxu0 0.0
    %113 = vmatpush1.msra.mxu0 0.0
    %114 = vmatprep.subr.mxu0 0.0
    %115 = vmatpush1.msra.mxu0 0.0
    %116 = vmatprep.subr.mxu0 0.0
    %117 = vmatpush1.msra.mxu0 0.0
    %118 = vmatprep.subr.mxu0 0.0
    %119 = vmatpush1.msra.mxu0 0.0
    %120 = vmatprep.subr.mxu0 0.0
    %121 = vmatpush1.msra.mxu0 0.0
    %122 = vmatprep.subr.mxu0 0.0
    %123 = vmatpush1.msra.mxu0 0.0
    %124 = vmatprep.subr.mxu0 0.0
    %125 = vmatpush1.msra.mxu0 0.0
    %126 = vmatprep.subr.mxu0 0.0
    %127 = vmatpush1.msra.mxu0 0.0
    %128 = vmatprep.subr.mxu0 0.0
    %129 = vmatpush1.msra.mxu0 0.0
    %130 = vmatprep.mubr.f32.mxu0 0.0
    %131 = vmatmul.mubr.f32.gmra.mrb[0].mxu0 %v64
    %v132 = vpop.f32.mrb[0].mxu0
    %v133 = vadd.f32 %v61, %v132
    %v134 = vpop.f32.mrb[0].mxu0
    %135 = vdwg.mxu0
    %v136 = vld [vmem:[#allocation7 + $0x1] sm:$0x1]
    %v137 = vld [vmem:[#allocation7 + $0x2] sm:$0x1]
    %v138 = vtanh.pop %v133
    %139 = vadd.xlane.f32.xlu0 %v138
    %v140 = vpop.xlane.xlu0 %139
    %v141 = vmul.f32 %v138, %v138
    %142 = vadd.xlane.f32.xlu0 %v141
    %v143 = vpop.xlane.xlu0 %142
    %v144 = vmul.f32 %v140, 0.015625
    %v145 = vmul.f32 %v143, 0.015625
    %v146 = vmul.f32 %v144, %v144
    %v147 = vsub.f32 %v145, %v146
    %v148 = vsub.f32 %v138, %v144
    %v149 = vadd.f32 %v147, 1e-05
    %v150 = vrsqrt.pop %v149
    %v151 = vmul.f32 %v148, %v150
    %v152 = vlaneseq
    %v153 = vshrl.u32 %v152, 7
    %v154 = vsub.s32 0, %v153
    %v155 = vrot.slane %v136, %v154
    %v156 = vmul.f32 %v151, %v155
    %v157 = vlaneseq
    %v158 = vshrl.u32 %v157, 7
    %v159 = vsub.s32 0, %v158
    %v160 = vrot.slane %v137, %v159
    %v161 = vadd.f32 %v156, %v160
    %v162 = vld [vmem:[#allocation5 + $0x20] sm:$0xff]
    %v163 = vld [vmem:[#allocation5 + $0x28] sm:$0xff]
    %v164 = vld [vmem:[#allocation5 + $0x30] sm:$0xff]
    %v165 = vld [vmem:[#allocation5 + $0x38] sm:$0xff]
    %v166 = vld [vmem:[#allocation5 + $0x40] sm:$0xff]
    %v167 = vld [vmem:[#allocation5 + $0x48] sm:$0xff]
    %v168 = vld [vmem:[#allocation5 + $0x50] sm:$0xff]
    %v169 = vld [vmem:[#allocation5 + $0x58] sm:$0xff]
    %v170 = vld [vmem:[#allocation5 + $0x60] sm:$0xff]
    %v171 = vld [vmem:[#allocation5 + $0x68] sm:$0xff]
    %v172 = vld [vmem:[#allocation5 + $0x70] sm:$0xff]
    %v173 = vld [vmem:[#allocation5 + $0x78] sm:$0xff]
    %v174 = vld [vmem:[#allocation5 + $0x80] sm:$0xff]
    %v175 = vld [vmem:[#allocation5 + $0x88] sm:$0xff]
    %v176 = vld [vmem:[#allocation5 + $0x90] sm:$0xff]
    %v177 = vld [vmem:[#allocation5 + $0x98] sm:$0xff]
    %v178 = vld [vmem:[#allocation7 + $0x3] sm:$0x1]
    %v179 = vlaneseq
    %v180 = vshrl.u32 %v179, 7
    %v181 = vsub.s32 0, %v180
    %v182 = vrot.slane %v178, %v181
    %183 = vmatprep.subr.mxu0 0.0
    %184 = vmatpush1.msra.mxu0 %v162
    %185 = vmatprep.subr.mxu0 0.0
    %186 = vmatpush1.msra.mxu0 %v163
    %187 = vmatprep.subr.mxu0 0.0
    %188 = vmatpush1.msra.mxu0 %v164
    %189 = vmatprep.subr.mxu0 0.0
    %190 = vmatpush1.msra.mxu0 %v165
    %191 = vmatprep.subr.mxu0 0.0
    %192 = vmatpush1.msra.mxu0 %v166
    %193 = vmatprep.subr.mxu0 0.0
    %194 = vmatpush1.msra.mxu0 %v167
    %195 = vmatprep.subr.mxu0 0.0
    %196 = vmatpush1.msra.mxu0 %v168
    %197 = vmatprep.subr.mxu0 0.0
    %198 = vmatpush1.msra.mxu0 %v169
    %199 = vmatprep.subr.mxu0 0.0
    %200 = vmatpush1.msra.mxu0 %v170
    %201 = vmatprep.subr.mxu0 0.0
    %202 = vmatpush1.msra.mxu0 %v171
    %203 = vmatprep.subr.mxu0 0.0
    %204 = vmatpush1.msra.mxu0 %v172
    %205 = vmatprep.subr.mxu0 0.0
    %206 = vmatpush1.msra.mxu0 %v173
    %207 = vmatprep.subr.mxu0 0.0
    %208 = vmatpush1.msra.mxu0 %v174
    %209 = vmatprep.subr.mxu0 0.0
    %210 = vmatpush1.msra.mxu0 %v175
    %211 = vmatprep.subr.mxu0 0.0
    %212 = vmatpush1.msra.mxu0 %v176
    %213 = vmatprep.subr.mxu0 0.0
    %214 = vmatpush1.msra.mxu0 %v177
    %215 = vmatprep.subr.mxu0 0.0
    %216 = vmatpush1.msra.mxu0 0.0
    %217 = vmatprep.subr.mxu0 0.0
    %218 = vmatpush1.msra.mxu0 0.0
    %219 = vmatprep.subr.mxu0 0.0
    %220 = vmatpush1.msra.mxu0 0.0
    %221 = vmatprep.subr.mxu0 0.0
    %222 = vmatpush1.msra.mxu0 0.0
    %223 = vmatprep.subr.mxu0 0.0
    %224 = vmatpush1.msra.mxu0 0.0
    %225 = vmatprep.subr.mxu0 0.0
    %226 = vmatpush1.msra.mxu0 0.0
    %227 = vmatprep.subr.mxu0 0.0
    %228 = vmatpush1.msra.mxu0 0.0
    %229 = vmatprep.subr.mxu0 0.0
    %230 = vmatpush1.msra.mxu0 0.0
    %231 = vmatprep.subr.mxu0 0.0
    %232 = vmatpush1.msra.mxu0 0.0
    %233 = vmatprep.subr.mxu0 0.0
    %234 = vmatpush1.msra.mxu0 0.0
    %235 = vmatprep.subr.mxu0 0.0
    %236 = vmatpush1.msra.mxu0 0.0
    %237 = vmatprep.subr.mxu0 0.0
    %238 = vmatpush1.msra.mxu0 0.0
    %239 = vmatprep.subr.mxu0 0.0
    %240 = vmatpush1.msra.mxu0 0.0
    %241 = vmatprep.subr.mxu0 0.0
    %242 = vmatpush1.msra.mxu0 0.0
    %243 = vmatprep.subr.mxu0 0.0
    %244 = vmatpush1.msra.mxu0 0.0
    %245 = vmatprep.subr.mxu0 0.0
    %246 = vmatpush1.msra.mxu0 0.0
    %247 = vmatprep.mubr.f32.mxu0 0.0
    %248 = vmatmul.mubr.f32.gmra.mrb[0].mxu0 %v161
    %v249 = vpop.f32.mrb[0].mxu0
    %v250 = vadd.f32 %v182, %v249
    %v251 = vpop.f32.mrb[0].mxu0
    %252 = vdwg.mxu0
    %253 = vst [vmem:[#allocation8] sm:$0xff] %v133
    %254 = vst [vmem:[#allocation8 + $0x8] sm:$0xff] %v138
    %255 = vst [vmem:[#allocation8 + $0x10] sm:$0xff] %v161
    %256 = vst [vmem:[#allocation8 + $0x18] sm:$0xff] %v250
    // Predicated region
    $region26: #{tpu_custom_call.1} parent=1 // pred_check
      _
    $region27: #{tpu_custom_call.1} parent=1 // pred_check_branch
      %258 = sbr.rel (0) target = $region29
    $region28: #{tpu_custom_call.1} parent=1 // pred_region
      %s260 = ssub.s32 512, 512
      %261 = vsyncadd [#allocation4], %s260
      %s263 = sshll.u32 [#allocation8], 4
      %s264 = int_to_ptr.vmem [resolvable:$true] %s263
      %266 = dma.vmem_to_hbm [thread:$0]  %s264, 512, %s3, [#allocation4]
    $region29: #{tpu_custom_call.1} parent=1 // pred_fallthru
      _
    // Predicated region
    $region30: #{tpu_custom_call.1} parent=1 // pred_check
      _
    $region31: #{tpu_custom_call.1} parent=1 // pred_check_branch
      %268 = sbr.rel (0) target = $region33
    $region32: #{tpu_custom_call.1} parent=1 // pred_region
      %269 = dma.done [#allocation4], 512
    $region33: #{tpu_custom_call.1} parent=1 // pred_fallthru
      _
    %270 = vsyncpa [#allocation3], 1
    %271 = vsyncpa [#allocation6], 1
    %272 = vsyncpa [#allocation4], 1

</llo_original>
